<compile_context>
chip_gen: v7x
topology: tpu7x:2x2x1
jax: 0.10.0
libtpu: 0.0.40
codegen_flags: <defaults>
</compile_context>

<pallas_src>
import math

import numpy as np
import jax
import jax.numpy as jnp
from jax.experimental import pallas as pl
from jax.experimental.pallas import tpu as pltpu

# Leduc poker sizes (game.observation_tensor_size(), game.num_distinct_actions())
INPUT_DIM = 30
HIDDEN = 32
NUM_ACTIONS = 3

# float32(log(float32(1e-45))): 1e-45 rounds to the f32 denormal 1.4012985e-45,
# whose log is ~-103.27893. Hard-coded so denormal flushing can't make it -inf.
LOG_EPS = -103.2789306640625

# ---- parameter-slab row layout (f32, 32 columns, one DMA) -------------------
W1_OFF = 0      # rows [ 0, 32): W1, real block [0:30, 0:32]
W2_OFF = 32     # rows [32, 64): W2 (32, 32)
W3_OFF = 64     # rows [64, 96): W3, real block [0:32, 0:3]
B1_ROW = 96     # b1 in cols [0:32]
B2_ROW = 97     # b2 in cols [0:32]
B3_ROW = 98     # b3 in cols [0:3]
SLAB_ROWS = 104  # multiple of 8
SLAB_COLS = HIDDEN  # 32


def policy_kernel(x_ref, mask_ref, slab_ref, out_ref):
    x = x_ref[...]                                        # (TB, 30)
    mask = mask_ref[...]                                  # (TB, 3)   {0,1}

    w1 = slab_ref[W1_OFF:W1_OFF + INPUT_DIM, :]           # (30, 32)
    w2 = slab_ref[W2_OFF:W2_OFF + HIDDEN, :]              # (32, 32)
    w3 = slab_ref[W3_OFF:W3_OFF + HIDDEN, 0:NUM_ACTIONS]  # (32, 3)
    b1 = slab_ref[B1_ROW:B1_ROW + 1, :]                   # (1, 32)
    b2 = slab_ref[B2_ROW:B2_ROW + 1, :]                   # (1, 32)
    b3 = slab_ref[B3_ROW:B3_ROW + 1, 0:NUM_ACTIONS]       # (1, 3)

    # 32-lane-wide MLP (no dead 128-lane padding).
    h1 = jnp.tanh(jnp.dot(x, w1, preferred_element_type=jnp.float32) + b1)
    h2 = jnp.tanh(jnp.dot(h1, w2, preferred_element_type=jnp.float32) + b2)

    # logits_j = (h2 @ W3)_j + b3_j + log(mask_j + 1e-45)
    #          = raw logit + (0 if legal else LOG_EPS)   -- mask bias on the VPU
    logits = (jnp.dot(h2, w3, preferred_element_type=jnp.float32)
              + b3 + LOG_EPS * (1.0 - mask))              # (TB, 3)

    # log_softmax over the 3 action lanes.
    m = jnp.max(logits, axis=-1, keepdims=True)
    shifted = logits - m
    lse = jnp.log(jnp.sum(jnp.exp(shifted), axis=-1, keepdims=True))
    out_ref[...] = shifted - lse


def init_params(key):
    """Deterministic init matching nn.Linear shapes (weights stored (in,out))."""
    ks = jax.random.split(key, 6)

    def uniform(k, shape, fan_in):
        bound = 1.0 / math.sqrt(fan_in)
        return jax.random.uniform(k, shape, jnp.float32, -bound, bound)

    return {
        "w1": uniform(ks[0], (INPUT_DIM, HIDDEN), INPUT_DIM),
        "b1": uniform(ks[1], (HIDDEN,), INPUT_DIM),
        "w2": uniform(ks[2], (HIDDEN, HIDDEN), HIDDEN),
        "b2": uniform(ks[3], (HIDDEN,), HIDDEN),
        "w3": uniform(ks[4], (HIDDEN, NUM_ACTIONS), HIDDEN),
        "b3": uniform(ks[5], (NUM_ACTIONS,), HIDDEN),
    }


def pack_params(params):
    """Pack all weights/biases into one small f32 slab (single DMA)."""
    slab = np.zeros((SLAB_ROWS, SLAB_COLS), np.float32)
    slab[W1_OFF:W1_OFF + INPUT_DIM, 0:HIDDEN] = np.asarray(params["w1"])
    slab[W2_OFF:W2_OFF + HIDDEN, 0:HIDDEN] = np.asarray(params["w2"])
    slab[W3_OFF:W3_OFF + HIDDEN, 0:NUM_ACTIONS] = np.asarray(params["w3"])
    slab[B1_ROW, 0:HIDDEN] = np.asarray(params["b1"])
    slab[B2_ROW, 0:HIDDEN] = np.asarray(params["b2"])
    slab[B3_ROW, 0:NUM_ACTIONS] = np.asarray(params["b3"])
    return jnp.asarray(slab)


def _batch_tile(b):
    """Batch tile: multiple of 8, capped at 1024, and for b>=16 sized ~b/2 so
    the parallel batch axis has >=2 grid steps (both v7x TensorCores busy)."""
    cap = 1024
    if b <= 8:
        return 8
    half = (((b + 1) // 2) + 7) // 8 * 8   # round_up(ceil(b/2), 8)
    return min(cap, half)


@jax.jit
def policy_forward(state_tensor, action_mask_f32, param_slab):
    B = state_tensor.shape[0]
    TB = _batch_tile(B)

    x = state_tensor.astype(jnp.float32)          # (B, 30) -- no padding copies
    mask = action_mask_f32.astype(jnp.float32)    # (B, 3)

    out = pl.pallas_call(
        policy_kernel,
        out_shape=jax.ShapeDtypeStruct((B, NUM_ACTIONS), jnp.float32),
        grid=(pl.cdiv(B, TB),),
        in_specs=[
            pl.BlockSpec((TB, INPUT_DIM), lambda i: (i, 0)),        # x tile
            pl.BlockSpec((TB, NUM_ACTIONS), lambda i: (i, 0)),      # mask tile
            pl.BlockSpec((SLAB_ROWS, SLAB_COLS), lambda i: (0, 0)),  # resident slab
        ],
        out_specs=pl.BlockSpec((TB, NUM_ACTIONS), lambda i: (i, 0)),
        compiler_params=pltpu.CompilerParams(
            dimension_semantics=("parallel",)),
    )(x, mask, param_slab)

    return out


def reference_forward(state_tensor, action_mask_f32, params):
    h1 = jnp.tanh(state_tensor @ params["w1"] + params["b1"])
    h2 = jnp.tanh(h1 @ params["w2"] + params["b2"])
    logits = h2 @ params["w3"] + params["b3"]
    logits = logits + jnp.where(action_mask_f32 > 0.5, 0.0, LOG_EPS)
    return jax.nn.log_softmax(logits, axis=-1)


if __name__ == "__main__":
    key = jax.random.PRNGKey(0)
    k_x, k_m, k_p = jax.random.split(key, 3)

    B = 8
    # batch of Leduc observation vectors
    x = jax.random.normal(k_x, (B, INPUT_DIM), jnp.float32)
    # boolean legal-action mask (ensure at least one legal action per row)
    mask_bool = jax.random.bernoulli(k_m, 0.7, (B, NUM_ACTIONS))
    mask_bool = mask_bool.at[:, 0].set(True)
    mask_f32 = mask_bool.astype(jnp.float32)

    params = init_params(k_p)
    slab = pack_params(params)

    out = policy_forward(x, mask_f32, slab)
    out = jax.block_until_ready(out)

    ref = reference_forward(x, mask_f32, params)
    np.testing.assert_allclose(np.asarray(out), np.asarray(ref),
                               rtol=1e-5, atol=3e-5)

    print("KERNEL_OK")
</pallas_src>

<mosaic_0001>
module attributes {stable_mosaic.version = 11 : i64} {
  func.func @policy_kernel(%arg0: i32, %arg1: memref<8x30xf32, #tpu.memory_space<vmem>>, %arg2: memref<8x3xf32, #tpu.memory_space<vmem>>, %arg3: memref<104x32xf32, #tpu.memory_space<vmem>>, %arg4: memref<8x3xf32, #tpu.memory_space<vmem>>) attributes {dimension_semantics = [#tpu.dimension_semantics<parallel>], iteration_bounds = array<i64: 1>, scalar_prefetch = 0 : i64, scratch_operands = 0 : i64, tpu.core_type = #tpu.core_type<tc>, window_params = [{transform_indices = @transform_0, window_bounds = array<i64: 8, 30>}, {transform_indices = @transform_1, window_bounds = array<i64: 8, 3>}, {pipeline_mode = #tpu.pipeline_mode<synchronous>, transform_indices = @transform_2, window_bounds = array<i64: 104, 32>}, {transform_indices = @transform_3, window_bounds = array<i64: 8, 3>}]} {
    %c0 = arith.constant 0 : index
    %c0_0 = arith.constant 0 : index
    %0 = vector.load %arg1[%c0, %c0_0] : memref<8x30xf32, #tpu.memory_space<vmem>>, vector<8x30xf32>
    %c0_1 = arith.constant 0 : index
    %c0_2 = arith.constant 0 : index
    %1 = vector.load %arg2[%c0_1, %c0_2] : memref<8x3xf32, #tpu.memory_space<vmem>>, vector<8x3xf32>
    %c0_3 = arith.constant 0 : index
    %c0_4 = arith.constant 0 : index
    %2 = vector.load %arg3[%c0_3, %c0_4] : memref<104x32xf32, #tpu.memory_space<vmem>>, vector<30x32xf32>
    %c32 = arith.constant 32 : index
    %c0_5 = arith.constant 0 : index
    %3 = vector.load %arg3[%c32, %c0_5] : memref<104x32xf32, #tpu.memory_space<vmem>>, vector<32x32xf32>
    %c64 = arith.constant 64 : index
    %c0_6 = arith.constant 0 : index
    %4 = vector.load %arg3[%c64, %c0_6] : memref<104x32xf32, #tpu.memory_space<vmem>>, vector<32x3xf32>
    %c96 = arith.constant 96 : index
    %c0_7 = arith.constant 0 : index
    %5 = vector.load %arg3[%c96, %c0_7] : memref<104x32xf32, #tpu.memory_space<vmem>>, vector<1x32xf32>
    %c97 = arith.constant 97 : index
    %c0_8 = arith.constant 0 : index
    %6 = vector.load %arg3[%c97, %c0_8] : memref<104x32xf32, #tpu.memory_space<vmem>>, vector<1x32xf32>
    %c98 = arith.constant 98 : index
    %c0_9 = arith.constant 0 : index
    %7 = vector.load %arg3[%c98, %c0_9] : memref<104x32xf32, #tpu.memory_space<vmem>>, vector<1x3xf32>
    %cst = arith.constant dense<0.000000e+00> : vector<8x32xf32>
    %8 = tpu.matmul %0, %2, %cst {dimension_numbers = #tpu.dot_dimension_numbers<[1], [0], [0], [1], [0, 0, 1, 1], [], []>} : vector<8x30xf32>, vector<30x32xf32>, vector<8x32xf32> -> vector<8x32xf32>
    %9 = vector.broadcast %5 : vector<1x32xf32> to vector<8x32xf32>
    %10 = arith.addf %8, %9 : vector<8x32xf32>
    %11 = math.tanh %10 : vector<8x32xf32>
    %cst_10 = arith.constant dense<0.000000e+00> : vector<8x32xf32>
    %12 = tpu.matmul %11, %3, %cst_10 {dimension_numbers = #tpu.dot_dimension_numbers<[1], [0], [0], [1], [0, 0, 1, 1], [], []>} : vector<8x32xf32>, vector<32x32xf32>, vector<8x32xf32> -> vector<8x32xf32>
    %13 = vector.broadcast %6 : vector<1x32xf32> to vector<8x32xf32>
    %14 = arith.addf %12, %13 : vector<8x32xf32>
    %15 = math.tanh %14 : vector<8x32xf32>
    %cst_11 = arith.constant dense<0.000000e+00> : vector<8x3xf32>
    %16 = tpu.matmul %15, %4, %cst_11 {dimension_numbers = #tpu.dot_dimension_numbers<[1], [0], [0], [1], [0, 0, 1, 1], [], []>} : vector<8x32xf32>, vector<32x3xf32>, vector<8x3xf32> -> vector<8x3xf32>
    %17 = vector.broadcast %7 : vector<1x3xf32> to vector<8x3xf32>
    %18 = arith.addf %16, %17 : vector<8x3xf32>
    %cst_12 = arith.constant 1.000000e+00 : f32
    %19 = vector.broadcast %cst_12 : f32 to vector<8x3xf32>
    %20 = arith.subf %19, %1 : vector<8x3xf32>
    %cst_13 = arith.constant -103.278931 : f32
    %21 = vector.broadcast %cst_13 : f32 to vector<8x3xf32>
    %22 = arith.mulf %21, %20 : vector<8x3xf32>
    %23 = arith.addf %18, %22 : vector<8x3xf32>
    %cst_14 = arith.constant dense<0xFF800000> : vector<8xf32>
    %24 = vector.multi_reduction <maximumf>, %23, %cst_14 [1] : vector<8x3xf32> to vector<8xf32>
    %25 = vector.shape_cast %24 : vector<8xf32> to vector<8x1xf32>
    %26 = vector.broadcast %25 : vector<8x1xf32> to vector<8x3xf32>
    %27 = arith.subf %23, %26 : vector<8x3xf32>
    %28 = math.exp %27 : vector<8x3xf32>
    %cst_15 = arith.constant dense<0.000000e+00> : vector<8xf32>
    %29 = vector.multi_reduction <add>, %28, %cst_15 [1] : vector<8x3xf32> to vector<8xf32>
    %30 = vector.shape_cast %29 : vector<8xf32> to vector<8x1xf32>
    %31 = math.log %30 : vector<8x1xf32>
    %32 = vector.broadcast %31 : vector<8x1xf32> to vector<8x3xf32>
    %33 = arith.subf %27, %32 : vector<8x3xf32>
    %c0_16 = arith.constant 0 : index
    %c0_17 = arith.constant 0 : index
    %34 = vector.load %arg4[%c0_16, %c0_17] : memref<8x3xf32, #tpu.memory_space<vmem>>, vector<8x3xf32>
    tpu.vector_store %arg4[%c0_16, %c0_17], %33 {strides = array<i32>} : memref<8x3xf32, #tpu.memory_space<vmem>>, vector<8x3xf32>,
    return
  }
  func.func @transform_0(%arg0: i32) -> (i32, i32) {
    %c0_i32 = arith.constant 0 : i32
    %c0_i32_0 = arith.constant 0 : i32
    return %arg0, %c0_i32 : i32, i32
  }
  func.func @transform_1(%arg0: i32) -> (i32, i32) {
    %c0_i32 = arith.constant 0 : i32
    %c0_i32_0 = arith.constant 0 : i32
    return %arg0, %c0_i32 : i32, i32
  }
  func.func @transform_2(%arg0: i32) -> (i32, i32) {
    %c0_i32 = arith.constant 0 : i32
    %c0_i32_0 = arith.constant 0 : i32
    %c0_i32_1 = arith.constant 0 : i32
    return %c0_i32, %c0_i32_0 : i32, i32
  }
  func.func @transform_3(%arg0: i32) -> (i32, i32) {
    %c0_i32 = arith.constant 0 : i32
    %c0_i32_0 = arith.constant 0 : i32
    return %arg0, %c0_i32 : i32, i32
  }
}

</mosaic_0001>

<llo_original>
// kernel: policy_forward.1
$region0: #{policy_forward.1}
  #allocation0 [shape = 'u32[]', space=smem, size = 0x4, offset = 0x4, fixed_abs, tag = 'smem constant byte address 0x4 - core index']
  #allocation1 [shape = 'u32[144,128]{1,0:T(1,128)}', space=vmem, size = 0x12000, scoped, tag = 'internal scratch']
  %s0 = inlined_call_operand.vmem [shape: f32[8,30], index: 0, kind: input, shape index: {}]
  %s1 = inlined_call_operand.vmem [shape: f32[8,3], index: 1, kind: input, shape index: {}]
  %s2 = inlined_call_operand.vmem [shape: f32[104,32], index: 2, kind: input, shape index: {}]
  %s3 = inlined_call_operand.vmem [shape: f32[8,3], index: 3, kind: output, shape index: {}]
  %s4 = sld [smem:[#allocation0]]
  $region22: #{policy_forward.1} parent=0
    _
  %s6 = ssub.s32 1, %s4
  %s7 = scalar_select 0, %s6, %s4
  // Predicated region
  $region2: #{policy_forward.1} parent=0 // pred_check
    _
  $region3: #{policy_forward.1} parent=0 // pred_check_branch
    %9 = sbr.rel (0) target = $region5
  $region4: #{policy_forward.1} parent=0 // pred_region
    _
  $region5: #{policy_forward.1} parent=0 // pred_fallthru
    _
  // Predicated region
  $region6: #{policy_forward.1} parent=0 // pred_check
    _
  $region7: #{policy_forward.1} parent=0 // pred_check_branch
    %11 = sbr.rel (0) target = $region9
  $region8: #{policy_forward.1} parent=0 // pred_region
    _
  $region9: #{policy_forward.1} parent=0 // pred_fallthru
    _
  // Predicated region
  $region10: #{policy_forward.1} parent=0 // pred_check
    _
  $region11: #{policy_forward.1} parent=0 // pred_check_branch
    %13 = sbr.rel (0) target = $region13
  $region12: #{policy_forward.1} parent=0 // pred_region
    _
  $region13: #{policy_forward.1} parent=0 // pred_fallthru
    _
  %v14 = vld [vmem:[%s0] sm:$0xff]
  %v15 = vld [vmem:[%s1] sm:$0xff]
  %v16 = vld [vmem:[%s2] sm:$0xff]
  %v17 = vld [vmem:[%s2 + $0x8] sm:$0xff]
  %v18 = vld [vmem:[%s2 + $0x10] sm:$0xff]
  %v19 = vld [vmem:[%s2 + $0x18] sm:$0x3f]
  %v20 = vld [vmem:[%s2 + $0x20] sm:$0xff]
  %v21 = vld [vmem:[%s2 + $0x28] sm:$0xff]
  %v22 = vld [vmem:[%s2 + $0x30] sm:$0xff]
  %v23 = vld [vmem:[%s2 + $0x38] sm:$0xff]
  %v24 = vld [vmem:[%s2 + $0x40] sm:$0xff]
  %v25 = vld [vmem:[%s2 + $0x48] sm:$0xff]
  %v26 = vld [vmem:[%s2 + $0x50] sm:$0xff]
  %v27 = vld [vmem:[%s2 + $0x58] sm:$0xff]
  %v28 = vld [vmem:[%s2 + $0x60] sm:$0x1]
  %v29 = vld [vmem:[%s2 + $0x61] sm:$0x1]
  %v30 = vld [vmem:[%s2 + $0x62] sm:$0x1]
  %v31 = vlaneseq
  %v32 = vshrl.u32 %v31, 7
  %v33 = vsub.s32 0, %v32
  %v34 = vrot.slane %v28, %v33
  %vm35 = vcmask 244736
  %v37 = vsel %vm35, %v14, 0
  %vm39 = vcmask 1045504
  %v41 = vsel %vm39, %v19, 0
  %43 = vmatprep.subr.mxu0 0.0
  %44 = vmatpush1.msra.mxu0 %v16
  %45 = vmatprep.subr.mxu0 0.0
  %46 = vmatpush1.msra.mxu0 %v17
  %47 = vmatprep.subr.mxu0 0.0
  %48 = vmatpush1.msra.mxu0 %v18
  %49 = vmatprep.subr.mxu0 0.0
  %50 = vmatpush1.msra.mxu0 %v41
  %51 = vmatprep.subr.mxu0 0.0
  %52 = vmatpush1.msra.mxu0 0.0
  %53 = vmatprep.subr.mxu0 0.0
  %54 = vmatpush1.msra.mxu0 0.0
  %55 = vmatprep.subr.mxu0 0.0
  %56 = vmatpush1.msra.mxu0 0.0
  %57 = vmatprep.subr.mxu0 0.0
  %58 = vmatpush1.msra.mxu0 0.0
  %59 = vmatprep.subr.mxu0 0.0
  %60 = vmatpush1.msra.mxu0 0.0
  %61 = vmatprep.subr.mxu0 0.0
  %62 = vmatpush1.msra.mxu0 0.0
  %63 = vmatprep.subr.mxu0 0.0
  %64 = vmatpush1.msra.mxu0 0.0
  %65 = vmatprep.subr.mxu0 0.0
  %66 = vmatpush1.msra.mxu0 0.0
  %67 = vmatprep.subr.mxu0 0.0
  %68 = vmatpush1.msra.mxu0 0.0
  %69 = vmatprep.subr.mxu0 0.0
  %70 = vmatpush1.msra.mxu0 0.0
  %71 = vmatprep.subr.mxu0 0.0
  %72 = vmatpush1.msra.mxu0 0.0
  %73 = vmatprep.subr.mxu0 0.0
  %74 = vmatpush1.msra.mxu0 0.0
  %75 = vmatprep.subr.mxu0 0.0
  %76 = vmatpush1.msra.mxu0 0.0
  %77 = vmatprep.subr.mxu0 0.0
  %78 = vmatpush1.msra.mxu0 0.0
  %79 = vmatprep.subr.mxu0 0.0
  %80 = vmatpush1.msra.mxu0 0.0
  %81 = vmatprep.subr.mxu0 0.0
  %82 = vmatpush1.msra.mxu0 0.0
  %83 = vmatprep.subr.mxu0 0.0
  %84 = vmatpush1.msra.mxu0 0.0
  %85 = vmatprep.subr.mxu0 0.0
  %86 = vmatpush1.msra.mxu0 0.0
  %87 = vmatprep.subr.mxu0 0.0
  %88 = vmatpush1.msra.mxu0 0.0
  %89 = vmatprep.subr.mxu0 0.0
  %90 = vmatpush1.msra.mxu0 0.0
  %91 = vmatprep.subr.mxu0 0.0
  %92 = vmatpush1.msra.mxu0 0.0
  %93 = vmatprep.subr.mxu0 0.0
  %94 = vmatpush1.msra.mxu0 0.0
  %95 = vmatprep.subr.mxu0 0.0
  %96 = vmatpush1.msra.mxu0 0.0
  %97 = vmatprep.subr.mxu0 0.0
  %98 = vmatpush1.msra.mxu0 0.0
  %99 = vmatprep.subr.mxu0 0.0
  %100 = vmatpush1.msra.mxu0 0.0
  %101 = vmatprep.subr.mxu0 0.0
  %102 = vmatpush1.msra.mxu0 0.0
  %103 = vmatprep.subr.mxu0 0.0
  %104 = vmatpush1.msra.mxu0 0.0
  %105 = vmatprep.subr.mxu0 0.0
  %106 = vmatpush1.msra.mxu0 0.0
  %107 = vmatprep.mubr.f32.mxu0 0.0
  %108 = vmatmul.mubr.f32.gmra.mrb[0].mxu0 %v37
  %v109 = vpop.f32.mrb[0].mxu0
  %v110 = vadd.f32 %v34, %v109
  %v111 = vpop.f32.mrb[0].mxu0
  %112 = vdwg.mxu0
  %v113 = vtanh.pop %v110
  %v114 = vlaneseq
  %v115 = vshrl.u32 %v114, 7
  %v116 = vsub.s32 0, %v115
  %v117 = vrot.slane %v29, %v116
  %vm118 = vcmask 261120
  %v120 = vsel %vm118, %v113, 0
  %122 = vmatprep.subr.mxu0 0.0
  %123 = vmatpush1.msra.mxu0 %v20
  %124 = vmatprep.subr.mxu0 0.0
  %125 = vmatpush1.msra.mxu0 %v21
  %126 = vmatprep.subr.mxu0 0.0
  %127 = vmatpush1.msra.mxu0 %v22
  %128 = vmatprep.subr.mxu0 0.0
  %129 = vmatpush1.msra.mxu0 %v23
  %130 = vmatprep.subr.mxu0 0.0
  %131 = vmatpush1.msra.mxu0 0.0
  %132 = vmatprep.subr.mxu0 0.0
  %133 = vmatpush1.msra.mxu0 0.0
  %134 = vmatprep.subr.mxu0 0.0
  %135 = vmatpush1.msra.mxu0 0.0
  %136 = vmatprep.subr.mxu0 0.0
  %137 = vmatpush1.msra.mxu0 0.0
  %138 = vmatprep.subr.mxu0 0.0
  %139 = vmatpush1.msra.mxu0 0.0
  %140 = vmatprep.subr.mxu0 0.0
  %141 = vmatpush1.msra.mxu0 0.0
  %142 = vmatprep.subr.mxu0 0.0
  %143 = vmatpush1.msra.mxu0 0.0
  %144 = vmatprep.subr.mxu0 0.0
  %145 = vmatpush1.msra.mxu0 0.0
  %146 = vmatprep.subr.mxu0 0.0
  %147 = vmatpush1.msra.mxu0 0.0
  %148 = vmatprep.subr.mxu0 0.0
  %149 = vmatpush1.msra.mxu0 0.0
  %150 = vmatprep.subr.mxu0 0.0
  %151 = vmatpush1.msra.mxu0 0.0
  %152 = vmatprep.subr.mxu0 0.0
  %153 = vmatpush1.msra.mxu0 0.0
  %154 = vmatprep.subr.mxu0 0.0
  %155 = vmatpush1.msra.mxu0 0.0
  %156 = vmatprep.subr.mxu0 0.0
  %157 = vmatpush1.msra.mxu0 0.0
  %158 = vmatprep.subr.mxu0 0.0
  %159 = vmatpush1.msra.mxu0 0.0
  %160 = vmatprep.subr.mxu0 0.0
  %161 = vmatpush1.msra.mxu0 0.0
  %162 = vmatprep.subr.mxu0 0.0
  %163 = vmatpush1.msra.mxu0 0.0
  %164 = vmatprep.subr.mxu0 0.0
  %165 = vmatpush1.msra.mxu0 0.0
  %166 = vmatprep.subr.mxu0 0.0
  %167 = vmatpush1.msra.mxu0 0.0
  %168 = vmatprep.subr.mxu0 0.0
  %169 = vmatpush1.msra.mxu0 0.0
  %170 = vmatprep.subr.mxu0 0.0
  %171 = vmatpush1.msra.mxu0 0.0
  %172 = vmatprep.subr.mxu0 0.0
  %173 = vmatpush1.msra.mxu0 0.0
  %174 = vmatprep.subr.mxu0 0.0
  %175 = vmatpush1.msra.mxu0 0.0
  %176 = vmatprep.subr.mxu0 0.0
  %177 = vmatpush1.msra.mxu0 0.0
  %178 = vmatprep.subr.mxu0 0.0
  %179 = vmatpush1.msra.mxu0 0.0
  %180 = vmatprep.subr.mxu0 0.0
  %181 = vmatpush1.msra.mxu0 0.0
  %182 = vmatprep.subr.mxu0 0.0
  %183 = vmatpush1.msra.mxu0 0.0
  %184 = vmatprep.subr.mxu0 0.0
  %185 = vmatpush1.msra.mxu0 0.0
  %186 = vmatprep.mubr.f32.mxu0 0.0
  %187 = vmatmul.mubr.f32.gmra.mrb[0].mxu0 %v120
  %v188 = vpop.f32.mrb[0].mxu0
  %v189 = vadd.f32 %v117, %v188
  %v190 = vpop.f32.mrb[0].mxu0
  %191 = vdwg.mxu0
  %v192 = vtanh.pop %v189
  %v193 = vlaneseq
  %v194 = vshrl.u32 %v193, 7
  %v195 = vsub.s32 0, %v194
  %v196 = vrot.slane %v30, %v195
  %v198 = vsel %vm118, %v192, 0
  %200 = vmatprep.subr.mxu0 0.0
  %201 = vmatpush1.msra.mxu0 %v24
  %202 = vmatprep.subr.mxu0 0.0
  %203 = vmatpush1.msra.mxu0 %v25
  %204 = vmatprep.subr.mxu0 0.0
  %205 = vmatpush1.msra.mxu0 %v26
  %206 = vmatprep.subr.mxu0 0.0
  %207 = vmatpush1.msra.mxu0 %v27
  %208 = vmatprep.subr.mxu0 0.0
  %209 = vmatpush1.msra.mxu0 0.0
  %210 = vmatprep.subr.mxu0 0.0
  %211 = vmatpush1.msra.mxu0 0.0
  %212 = vmatprep.subr.mxu0 0.0
  %213 = vmatpush1.msra.mxu0 0.0
  %214 = vmatprep.subr.mxu0 0.0
  %215 = vmatpush1.msra.mxu0 0.0
  %216 = vmatprep.subr.mxu0 0.0
  %217 = vmatpush1.msra.mxu0 0.0
  %218 = vmatprep.subr.mxu0 0.0
  %219 = vmatpush1.msra.mxu0 0.0
  %220 = vmatprep.subr.mxu0 0.0
  %221 = vmatpush1.msra.mxu0 0.0
  %222 = vmatprep.subr.mxu0 0.0
  %223 = vmatpush1.msra.mxu0 0.0
  %224 = vmatprep.subr.mxu0 0.0
  %225 = vmatpush1.msra.mxu0 0.0
  %226 = vmatprep.subr.mxu0 0.0
  %227 = vmatpush1.msra.mxu0 0.0
  %228 = vmatprep.subr.mxu0 0.0
  %229 = vmatpush1.msra.mxu0 0.0
  %230 = vmatprep.subr.mxu0 0.0
  %231 = vmatpush1.msra.mxu0 0.0
  %232 = vmatprep.subr.mxu0 0.0
  %233 = vmatpush1.msra.mxu0 0.0
  %234 = vmatprep.subr.mxu0 0.0
  %235 = vmatpush1.msra.mxu0 0.0
  %236 = vmatprep.subr.mxu0 0.0
  %237 = vmatpush1.msra.mxu0 0.0
  %238 = vmatprep.subr.mxu0 0.0
  %239 = vmatpush1.msra.mxu0 0.0
  %240 = vmatprep.subr.mxu0 0.0
  %241 = vmatpush1.msra.mxu0 0.0
  %242 = vmatprep.subr.mxu0 0.0
  %243 = vmatpush1.msra.mxu0 0.0
  %244 = vmatprep.subr.mxu0 0.0
  %245 = vmatpush1.msra.mxu0 0.0
  %246 = vmatprep.subr.mxu0 0.0
  %247 = vmatpush1.msra.mxu0 0.0
  %248 = vmatprep.subr.mxu0 0.0
  %249 = vmatpush1.msra.mxu0 0.0
  %250 = vmatprep.subr.mxu0 0.0
  %251 = vmatpush1.msra.mxu0 0.0
  %252 = vmatprep.subr.mxu0 0.0
  %253 = vmatpush1.msra.mxu0 0.0
  %254 = vmatprep.subr.mxu0 0.0
  %255 = vmatpush1.msra.mxu0 0.0
  %256 = vmatprep.subr.mxu0 0.0
  %257 = vmatpush1.msra.mxu0 0.0
  %258 = vmatprep.subr.mxu0 0.0
  %259 = vmatpush1.msra.mxu0 0.0
  %260 = vmatprep.subr.mxu0 0.0
  %261 = vmatpush1.msra.mxu0 0.0
  %262 = vmatprep.subr.mxu0 0.0
  %263 = vmatpush1.msra.mxu0 0.0
  %264 = vmatprep.mubr.f32.mxu0 0.0
  %265 = vmatmul.mubr.f32.gmra.mrb[0].mxu0 %v198
  %v266 = vpop.f32.mrb[0].mxu0
  %v267 = vadd.f32 %v196, %v266
  %v268 = vpop.f32.mrb[0].mxu0
  %269 = vdwg.mxu0
  %v270 = vsub.f32 1.0, %v15
  %v271 = vmul.f32 %v270, -103.27893
  %v272 = vadd.f32 %v267, %v271
  %vm273 = vcmask 23552
  %v274 = vsel %vm273, %v272, -inf
  %275 = vmax.xlane.f32.xlu0 %v274
  %v276 = vpop.xlane.xlu0 %275
  %v277 = vsub.f32 %v272, %v276
  %v278 = vmul.f32 %v277, 1.442695
  %v279 = vpow.pop %v278
  %v280 = vsel %vm273, %v279, 0.0
  %281 = vadd.xlane.f32.xlu0 %v280
  %v282 = vpop.xlane.xlu0 %281
  %v283 = vlog2.pop %v282
  %v284 = vmul.f32 %v283, 0.6931472
  %v285 = vsub.f32 %v277, %v284
  %286 = vst.msk [vmem:[%s3] sm:$0xff] %vm273, %v285
  // Predicated region
  $region14: #{policy_forward.1} parent=0 // pred_check
    _
  $region15: #{policy_forward.1} parent=0 // pred_check_branch
    %288 = sbr.rel (0) target = $region17
  $region16: #{policy_forward.1} parent=0 // pred_region
    _
  $region17: #{policy_forward.1} parent=0 // pred_fallthru
    _
  // Predicated region
  $region18: #{policy_forward.1} parent=0 // pred_check
    _
  $region19: #{policy_forward.1} parent=0 // pred_check_branch
    %290 = sbr.rel (0) target = $region21
  $region20: #{policy_forward.1} parent=0 // pred_region
    _
  $region21: #{policy_forward.1} parent=0 // pred_fallthru
    _

</llo_original>
